<compile_context>
chip_gen: v5e
topology: v5e:2x2
jax: 0.10.0
libtpu: 0.0.40
codegen_flags: <defaults>
</compile_context>

<pallas_src>
import functools

import jax
import jax.numpy as jnp
from jax.experimental import pallas as pl
from jax.experimental.pallas import tpu as pltpu


def _round_up(x, m):
    return ((x + m - 1) // m) * m


def _conv_bn_relu_kernel(p_ref, w_ref, shift_ref, o_ref):
    # p_ref:     (tm, K_pad)   bf16 im2col patches tile
    # w_ref:     (K_pad, tn)   bf16 conv weight with BN scale folded in
    # shift_ref: (1, tn)       f32 folded shift = scale*bias + beta - scale*mean
    # o_ref:     (tm, tn)      f32 output tile (lane-dense, unmasked stores)
    acc = jnp.dot(p_ref[...], w_ref[...], preferred_element_type=jnp.float32)
    o_ref[...] = jnp.maximum(acc + shift_ref[...], 0.0).astype(o_ref.dtype)


def _im2col(x, kh, kw, stride, pad):
    # x: (N, C, H, W) -> patches (N, H_out, W_out, C*kh*kw) with C-major then
    # (kh, kw) ordering (matches PyTorch weight.reshape(C_out, -1)).
    n, c, h, w = x.shape
    xp = jnp.pad(x, ((0, 0), (0, 0), (pad, pad), (pad, pad)))
    h_out = (h + 2 * pad - kh) // stride + 1
    w_out = (w + 2 * pad - kw) // stride + 1
    cols = []
    for i in range(kh):
        for j in range(kw):
            cols.append(
                xp[:, :, i: i + stride * h_out: stride, j: j + stride * w_out: stride]
            )
    patches = jnp.stack(cols, axis=2)                    # (N, C, kh*kw, Ho, Wo)
    patches = patches.reshape(n, c * kh * kw, h_out, w_out)
    patches = jnp.transpose(patches, (0, 2, 3, 1))       # (N, Ho, Wo, C*kh*kw)
    return patches, h_out, w_out


@functools.partial(
    jax.jit, static_argnames=("stride", "pad", "channels_last", "tm"))
def basic_conv2d(x, weight, bias, gamma, beta, running_mean, running_var,
                 *, stride=1, pad=1, eps=1e-5, channels_last=False, tm=512):
    """Forward of BasicConv2d: ReLU(BN(Conv2d(x))), inference-mode BN."""
    n, c_in, h, w = x.shape
    c_out, c_in_w, kh, kw = weight.shape
    assert c_in == c_in_w

    # ---- fold conv bias + BatchNorm into per-channel scale / shift ---------
    scale = gamma / jnp.sqrt(running_var + eps)              # (C_out,)
    shift = scale * bias + beta - scale * running_mean       # (C_out,)

    # Fold BN scale into the weight columns (per output channel) so only the
    # shift-add + ReLU remain in the kernel epilogue.
    k = c_in * kh * kw
    w_mat = (weight.reshape(c_out, k) * scale[:, None]).T    # (K, C_out), f32

    # ---- im2col in bf16 -----------------------------------------------------
    patches, h_out, w_out = _im2col(x.astype(jnp.bfloat16), kh, kw, stride, pad)
    m = n * h_out * w_out
    patches = patches.reshape(m, k)                          # (M, K), bf16

    # ---- lane-dense padding: K and C_out to multiples of 128 ---------------
    tn = 256 if c_out > 128 else 128
    k_pad = _round_up(k, 128)
    n_pad = _round_up(c_out, tn)
    m_pad = _round_up(m, tm)

    patches = jnp.pad(patches, ((0, m_pad - m), (0, k_pad - k)))
    w_mat = jnp.pad(w_mat.astype(jnp.bfloat16),
                    ((0, k_pad - k), (0, n_pad - c_out)))
    shift_row = jnp.pad(shift.astype(jnp.float32),
                        (0, n_pad - c_out)).reshape(1, n_pad)

    # ---- VMEM budget (double-buffered tiles), headroom under v7x 64 MiB ----
    vmem_est = (2 * tm * k_pad * 2        # patches tiles, bf16
                + 2 * k_pad * tn * 2      # weight tile, bf16
                + 2 * tn * 4              # shift row, f32
                + 2 * tm * tn * 4)        # output tiles, f32
    vmem_limit = int(min(max(4 * vmem_est, 16 * 1024 * 1024),
                         48 * 1024 * 1024))

    out_flat = pl.pallas_call(
        _conv_bn_relu_kernel,
        out_shape=jax.ShapeDtypeStruct((m_pad, n_pad), jnp.float32),
        grid_spec=pltpu.PrefetchScalarGridSpec(
            num_scalar_prefetch=0,
            grid=(m_pad // tm, n_pad // tn),
            in_specs=[
                pl.BlockSpec((tm, k_pad), lambda i, j: (i, 0)),
                pl.BlockSpec((k_pad, tn), lambda i, j: (0, j)),
                pl.BlockSpec((1, tn), lambda i, j: (0, j)),
            ],
            out_specs=pl.BlockSpec((tm, tn), lambda i, j: (i, j)),
        ),
        compiler_params=pltpu.CompilerParams(
            dimension_semantics=("parallel", "parallel"),
            vmem_limit_bytes=vmem_limit),
    )(patches, w_mat, shift_row)

    out = out_flat[:m, :c_out].reshape(n, h_out, w_out, c_out)   # NHWC
    if channels_last:
        return out
    return jnp.transpose(out, (0, 3, 1, 2))                      # NCHW (PyTorch)


def _reference(x, weight, bias, gamma, beta, running_mean, running_var,
               *, stride=1, pad=1, eps=1e-5):
    # Same operand quantization as the kernel path: BN scale folded into the
    # weight, bf16 operands, f32 accumulation.
    scale = gamma / jnp.sqrt(running_var + eps)
    shift = scale * bias + beta - scale * running_mean
    w_scaled = weight * scale.reshape(-1, 1, 1, 1)
    y = jax.lax.conv_general_dilated(
        x.astype(jnp.bfloat16), w_scaled.astype(jnp.bfloat16),
        window_strides=(stride, stride),
        padding=((pad, pad), (pad, pad)),
        dimension_numbers=("NCHW", "OIHW", "NCHW"),
        preferred_element_type=jnp.float32)
    y = y + shift.reshape(1, -1, 1, 1)
    return jnp.maximum(y, 0.0)


if __name__ == "__main__":
    key = jax.random.PRNGKey(0)
    k_x, k_w, k_b, k_g, k_be, k_m, k_v = jax.random.split(key, 7)

    # Small shapes consistent with BasicConv2d(4, 8, 3, padding=1)
    N, C_in, H, W = 2, 4, 16, 16
    C_out, KH, KW = 8, 3, 3

    x = jax.random.normal(k_x, (N, C_in, H, W), dtype=jnp.float32)
    weight = 0.1 * jax.random.normal(k_w, (C_out, C_in, KH, KW), dtype=jnp.float32)
    bias = 0.1 * jax.random.normal(k_b, (C_out,), dtype=jnp.float32)
    gamma = 1.0 + 0.1 * jax.random.normal(k_g, (C_out,), dtype=jnp.float32)
    beta = 0.1 * jax.random.normal(k_be, (C_out,), dtype=jnp.float32)
    running_mean = 0.1 * jax.random.normal(k_m, (C_out,), dtype=jnp.float32)
    running_var = 1.0 + 0.1 * jnp.abs(
        jax.random.normal(k_v, (C_out,), dtype=jnp.float32))

    out = basic_conv2d(x, weight, bias, gamma, beta, running_mean, running_var,
                       stride=1, pad=1)
    out = jax.block_until_ready(out)

    ref = _reference(x, weight, bias, gamma, beta, running_mean, running_var,
                     stride=1, pad=1)
    assert out.shape == (N, C_out, H, W), out.shape
    max_err = float(jnp.max(jnp.abs(out - ref)))
    assert jnp.allclose(out, ref, atol=2e-3, rtol=2e-3), (
        f"mismatch vs reference, max abs err {max_err}")

    print("KERNEL_OK")
</pallas_src>

<mosaic_0001>
module attributes {stable_mosaic.version = 11 : i64} {
  func.func @_conv_bn_relu_kernel(%arg0: i32, %arg1: i32, %arg2: memref<512x128xbf16, #tpu.memory_space<vmem>>, %arg3: memref<128x128xbf16, #tpu.memory_space<vmem>>, %arg4: memref<1x128xf32, #tpu.memory_space<vmem>>, %arg5: memref<512x128xf32, #tpu.memory_space<vmem>>) attributes {dimension_semantics = [#tpu.dimension_semantics<parallel>, #tpu.dimension_semantics<parallel>], iteration_bounds = array<i64: 1, 1>, scalar_prefetch = 0 : i64, scratch_operands = 0 : i64, tpu.core_type = #tpu.core_type<tc>, window_params = [{transform_indices = @transform_0, window_bounds = array<i64: 512, 128>}, {transform_indices = @transform_1, window_bounds = array<i64: 128, 128>}, {transform_indices = @transform_2, window_bounds = array<i64: 1, 128>}, {transform_indices = @transform_3, window_bounds = array<i64: 512, 128>}]} {
    %c0 = arith.constant 0 : index
    %c0_0 = arith.constant 0 : index
    %0 = vector.load %arg2[%c0, %c0_0] : memref<512x128xbf16, #tpu.memory_space<vmem>>, vector<512x128xbf16>
    %c0_1 = arith.constant 0 : index
    %c0_2 = arith.constant 0 : index
    %1 = vector.load %arg3[%c0_1, %c0_2] : memref<128x128xbf16, #tpu.memory_space<vmem>>, vector<128x128xbf16>
    %cst = arith.constant dense<0.000000e+00> : vector<512x128xf32>
    %2 = tpu.matmul %0, %1, %cst {dimension_numbers = #tpu.dot_dimension_numbers<[1], [0], [0], [1], [0, 0, 1, 1], [], []>} : vector<512x128xbf16>, vector<128x128xbf16>, vector<512x128xf32> -> vector<512x128xf32>
    %c0_3 = arith.constant 0 : index
    %c0_4 = arith.constant 0 : index
    %3 = vector.load %arg4[%c0_3, %c0_4] : memref<1x128xf32, #tpu.memory_space<vmem>>, vector<1x128xf32>
    %4 = vector.broadcast %3 : vector<1x128xf32> to vector<512x128xf32>
    %5 = arith.addf %2, %4 : vector<512x128xf32>
    %cst_5 = arith.constant 0.000000e+00 : f32
    %6 = vector.broadcast %cst_5 : f32 to vector<512x128xf32>
    %7 = arith.maximumf %5, %6 : vector<512x128xf32>
    %c0_6 = arith.constant 0 : index
    %c0_7 = arith.constant 0 : index
    %8 = vector.load %arg5[%c0_6, %c0_7] : memref<512x128xf32, #tpu.memory_space<vmem>>, vector<512x128xf32>
    tpu.vector_store %arg5[%c0_6, %c0_7], %7 {strides = array<i32>} : memref<512x128xf32, #tpu.memory_space<vmem>>, vector<512x128xf32>,
    return
  }
  func.func @transform_0(%arg0: i32, %arg1: i32) -> (i32, i32) {
    %c0_i32 = arith.constant 0 : i32
    %c0_i32_0 = arith.constant 0 : i32
    return %arg0, %c0_i32 : i32, i32
  }
  func.func @transform_1(%arg0: i32, %arg1: i32) -> (i32, i32) {
    %c0_i32 = arith.constant 0 : i32
    %c0_i32_0 = arith.constant 0 : i32
    return %c0_i32, %arg1 : i32, i32
  }
  func.func @transform_2(%arg0: i32, %arg1: i32) -> (i32, i32) {
    %c0_i32 = arith.constant 0 : i32
    %c0_i32_0 = arith.constant 0 : i32
    return %c0_i32, %arg1 : i32, i32
  }
  func.func @transform_3(%arg0: i32, %arg1: i32) -> (i32, i32) {
    %c0_i32 = arith.constant 0 : i32
    return %arg0, %arg1 : i32, i32
  }
}

</mosaic_0001>

<llo_original>
// kernel: basic_conv2d.1
$region0: #{basic_conv2d.1}
  #allocation0 [shape = 'u32[]', space=smem, size = 0x4, offset = 0x4, fixed_abs, tag = 'smem constant byte address 0x4 - core index']
  #allocation1 [shape = 'u32[72,128]{1,0:T(1,128)}', space=vmem, size = 0x9000, scoped, tag = 'internal scratch']
  %s0 = inlined_call_operand.vmem [shape: bf16[512,128], index: 0, kind: input, shape index: {}]
  %s1 = inlined_call_operand.vmem [shape: bf16[128,128], index: 1, kind: input, shape index: {}]
  %s2 = inlined_call_operand.vmem [shape: f32[1,128], index: 2, kind: input, shape index: {}]
  %s3 = inlined_call_operand.vmem [shape: f32[512,128], index: 3, kind: output, shape index: {}]
  %s4 = sld [smem:[#allocation0]]
  $region22: #{basic_conv2d.1} parent=0
    _
  %s6 = ssub.s32 1, %s4
  %s7 = scalar_select 0, %s6, %s4
  // Predicated region
  $region2: #{basic_conv2d.1} parent=0 // pred_check
    _
  $region3: #{basic_conv2d.1} parent=0 // pred_check_branch
    %9 = sbr.rel (0) target = $region5
  $region4: #{basic_conv2d.1} parent=0 // pred_region
    _
  $region5: #{basic_conv2d.1} parent=0 // pred_fallthru
    _
  // Predicated region
  $region6: #{basic_conv2d.1} parent=0 // pred_check
    _
  $region7: #{basic_conv2d.1} parent=0 // pred_check_branch
    %11 = sbr.rel (0) target = $region9
  $region8: #{basic_conv2d.1} parent=0 // pred_region
    _
  $region9: #{basic_conv2d.1} parent=0 // pred_fallthru
    _
  // Predicated region
  $region10: #{basic_conv2d.1} parent=0 // pred_check
    _
  $region11: #{basic_conv2d.1} parent=0 // pred_check_branch
    %13 = sbr.rel (0) target = $region13
  $region12: #{basic_conv2d.1} parent=0 // pred_region
    _
  $region13: #{basic_conv2d.1} parent=0 // pred_fallthru
    _
  %v14 = vld [vmem:[%s0] sm:$0xf]
  %v15 = vld [vmem:[%s0 + $0x4] sm:$0xf]
  %v16 = vld [vmem:[%s0 + $0x8] sm:$0xf]
  %v17 = vld [vmem:[%s0 + $0xc] sm:$0xf]
  %v18 = vld [vmem:[%s0 + $0x10] sm:$0xf]
  %v19 = vld [vmem:[%s0 + $0x14] sm:$0xf]
  %v20 = vld [vmem:[%s0 + $0x18] sm:$0xf]
  %v21 = vld [vmem:[%s0 + $0x1c] sm:$0xf]
  %v22 = vld [vmem:[%s0 + $0x20] sm:$0xf]
  %v23 = vld [vmem:[%s0 + $0x24] sm:$0xf]
  %v24 = vld [vmem:[%s0 + $0x28] sm:$0xf]
  %v25 = vld [vmem:[%s0 + $0x2c] sm:$0xf]
  %v26 = vld [vmem:[%s0 + $0x30] sm:$0xf]
  %v27 = vld [vmem:[%s0 + $0x34] sm:$0xf]
  %v28 = vld [vmem:[%s0 + $0x38] sm:$0xf]
  %v29 = vld [vmem:[%s0 + $0x3c] sm:$0xf]
  %v30 = vld [vmem:[%s0 + $0x40] sm:$0xf]
  %v31 = vld [vmem:[%s0 + $0x44] sm:$0xf]
  %v32 = vld [vmem:[%s0 + $0x48] sm:$0xf]
  %v33 = vld [vmem:[%s0 + $0x4c] sm:$0xf]
  %v34 = vld [vmem:[%s0 + $0x50] sm:$0xf]
  %v35 = vld [vmem:[%s0 + $0x54] sm:$0xf]
  %v36 = vld [vmem:[%s0 + $0x58] sm:$0xf]
  %v37 = vld [vmem:[%s0 + $0x5c] sm:$0xf]
  %v38 = vld [vmem:[%s0 + $0x60] sm:$0xf]
  %v39 = vld [vmem:[%s0 + $0x64] sm:$0xf]
  %v40 = vld [vmem:[%s0 + $0x68] sm:$0xf]
  %v41 = vld [vmem:[%s0 + $0x6c] sm:$0xf]
  %v42 = vld [vmem:[%s0 + $0x70] sm:$0xf]
  %v43 = vld [vmem:[%s0 + $0x74] sm:$0xf]
  %v44 = vld [vmem:[%s0 + $0x78] sm:$0xf]
  %v45 = vld [vmem:[%s0 + $0x7c] sm:$0xf]
  %v46 = vld [vmem:[%s0 + $0x80] sm:$0xf]
  %v47 = vld [vmem:[%s0 + $0x84] sm:$0xf]
  %v48 = vld [vmem:[%s0 + $0x88] sm:$0xf]
  %v49 = vld [vmem:[%s0 + $0x8c] sm:$0xf]
  %v50 = vld [vmem:[%s0 + $0x90] sm:$0xf]
  %v51 = vld [vmem:[%s0 + $0x94] sm:$0xf]
  %v52 = vld [vmem:[%s0 + $0x98] sm:$0xf]
  %v53 = vld [vmem:[%s0 + $0x9c] sm:$0xf]
  %v54 = vld [vmem:[%s0 + $0xa0] sm:$0xf]
  %v55 = vld [vmem:[%s0 + $0xa4] sm:$0xf]
  %v56 = vld [vmem:[%s0 + $0xa8] sm:$0xf]
  %v57 = vld [vmem:[%s0 + $0xac] sm:$0xf]
  %v58 = vld [vmem:[%s0 + $0xb0] sm:$0xf]
  %v59 = vld [vmem:[%s0 + $0xb4] sm:$0xf]
  %v60 = vld [vmem:[%s0 + $0xb8] sm:$0xf]
  %v61 = vld [vmem:[%s0 + $0xbc] sm:$0xf]
  %v62 = vld [vmem:[%s0 + $0xc0] sm:$0xf]
  %v63 = vld [vmem:[%s0 + $0xc4] sm:$0xf]
  %v64 = vld [vmem:[%s0 + $0xc8] sm:$0xf]
  %v65 = vld [vmem:[%s0 + $0xcc] sm:$0xf]
  %v66 = vld [vmem:[%s0 + $0xd0] sm:$0xf]
  %v67 = vld [vmem:[%s0 + $0xd4] sm:$0xf]
  %v68 = vld [vmem:[%s0 + $0xd8] sm:$0xf]
  %v69 = vld [vmem:[%s0 + $0xdc] sm:$0xf]
  %v70 = vld [vmem:[%s0 + $0xe0] sm:$0xf]
  %v71 = vld [vmem:[%s0 + $0xe4] sm:$0xf]
  %v72 = vld [vmem:[%s0 + $0xe8] sm:$0xf]
  %v73 = vld [vmem:[%s0 + $0xec] sm:$0xf]
  %v74 = vld [vmem:[%s0 + $0xf0] sm:$0xf]
  %v75 = vld [vmem:[%s0 + $0xf4] sm:$0xf]
  %v76 = vld [vmem:[%s0 + $0xf8] sm:$0xf]
  %v77 = vld [vmem:[%s0 + $0xfc] sm:$0xf]
  %v78 = vld [vmem:[%s1] sm:$0xf]
  %v79 = vld [vmem:[%s1 + $0x4] sm:$0xf]
  %v80 = vld [vmem:[%s1 + $0x8] sm:$0xf]
  %v81 = vld [vmem:[%s1 + $0xc] sm:$0xf]
  %v82 = vld [vmem:[%s1 + $0x10] sm:$0xf]
  %v83 = vld [vmem:[%s1 + $0x14] sm:$0xf]
  %v84 = vld [vmem:[%s1 + $0x18] sm:$0xf]
  %v85 = vld [vmem:[%s1 + $0x1c] sm:$0xf]
  %v86 = vld [vmem:[%s1 + $0x20] sm:$0xf]
  %v87 = vld [vmem:[%s1 + $0x24] sm:$0xf]
  %v88 = vld [vmem:[%s1 + $0x28] sm:$0xf]
  %v89 = vld [vmem:[%s1 + $0x2c] sm:$0xf]
  %v90 = vld [vmem:[%s1 + $0x30] sm:$0xf]
  %v91 = vld [vmem:[%s1 + $0x34] sm:$0xf]
  %v92 = vld [vmem:[%s1 + $0x38] sm:$0xf]
  %v93 = vld [vmem:[%s1 + $0x3c] sm:$0xf]
  %v94 = vld [vmem:[%s2] sm:$0x1]
  %v96 = vperm.slane %v94, 0
  %v162 = vunpack.c.l.b16 %v14
  %v163 = vunpack.c.l.b16 %v15
  %v164 = vunpack.c.l.b16 %v16
  %v165 = vunpack.c.l.b16 %v17
  %v166 = vunpack.c.l.b16 %v18
  %v167 = vunpack.c.l.b16 %v19
  %v168 = vunpack.c.l.b16 %v20
  %v169 = vunpack.c.l.b16 %v21
  %v170 = vunpack.c.l.b16 %v22
  %v171 = vunpack.c.l.b16 %v23
  %v172 = vunpack.c.l.b16 %v24
  %v173 = vunpack.c.l.b16 %v25
  %v174 = vunpack.c.l.b16 %v26
  %v175 = vunpack.c.l.b16 %v27
  %v176 = vunpack.c.l.b16 %v28
  %v177 = vunpack.c.l.b16 %v29
  %v178 = vunpack.c.l.b16 %v30
  %v179 = vunpack.c.l.b16 %v31
  %v180 = vunpack.c.l.b16 %v32
  %v181 = vunpack.c.l.b16 %v33
  %v182 = vunpack.c.l.b16 %v34
  %v183 = vunpack.c.l.b16 %v35
  %v184 = vunpack.c.l.b16 %v36
  %v185 = vunpack.c.l.b16 %v37
  %v186 = vunpack.c.l.b16 %v38
  %v187 = vunpack.c.l.b16 %v39
  %v188 = vunpack.c.l.b16 %v40
  %v189 = vunpack.c.l.b16 %v41
  %v190 = vunpack.c.l.b16 %v42
  %v191 = vunpack.c.l.b16 %v43
  %v192 = vunpack.c.l.b16 %v44
  %v193 = vunpack.c.l.b16 %v45
  %v194 = vunpack.c.l.b16 %v46
  %v195 = vunpack.c.l.b16 %v47
  %v196 = vunpack.c.l.b16 %v48
  %v197 = vunpack.c.l.b16 %v49
  %v198 = vunpack.c.l.b16 %v50
  %v199 = vunpack.c.l.b16 %v51
  %v200 = vunpack.c.l.b16 %v52
  %v201 = vunpack.c.l.b16 %v53
  %v202 = vunpack.c.l.b16 %v54
  %v203 = vunpack.c.l.b16 %v55
  %v204 = vunpack.c.l.b16 %v56
  %v205 = vunpack.c.l.b16 %v57
  %v206 = vunpack.c.l.b16 %v58
  %v207 = vunpack.c.l.b16 %v59
  %v208 = vunpack.c.l.b16 %v60
  %v209 = vunpack.c.l.b16 %v61
  %v210 = vunpack.c.l.b16 %v62
  %v211 = vunpack.c.l.b16 %v63
  %v212 = vunpack.c.l.b16 %v64
  %v213 = vunpack.c.l.b16 %v65
  %v214 = vunpack.c.l.b16 %v66
  %v215 = vunpack.c.l.b16 %v67
  %v216 = vunpack.c.l.b16 %v68
  %v217 = vunpack.c.l.b16 %v69
  %v218 = vunpack.c.l.b16 %v70
  %v219 = vunpack.c.l.b16 %v71
  %v220 = vunpack.c.l.b16 %v72
  %v221 = vunpack.c.l.b16 %v73
  %v222 = vunpack.c.l.b16 %v74
  %v223 = vunpack.c.l.b16 %v75
  %v224 = vunpack.c.l.b16 %v76
  %v225 = vunpack.c.l.b16 %v77
  %v226 = vpack.c.b16 %v163, %v162
  %v227 = vpack.c.b16 %v165, %v164
  %v228 = vpack.c.b16 %v167, %v166
  %v229 = vpack.c.b16 %v169, %v168
  %v230 = vpack.c.b16 %v171, %v170
  %v231 = vpack.c.b16 %v173, %v172
  %v232 = vpack.c.b16 %v175, %v174
  %v233 = vpack.c.b16 %v177, %v176
  %v234 = vpack.c.b16 %v179, %v178
  %v235 = vpack.c.b16 %v181, %v180
  %v236 = vpack.c.b16 %v183, %v182
  %v237 = vpack.c.b16 %v185, %v184
  %v238 = vpack.c.b16 %v187, %v186
  %v239 = vpack.c.b16 %v189, %v188
  %v240 = vpack.c.b16 %v191, %v190
  %v241 = vpack.c.b16 %v193, %v192
  %v242 = vpack.c.b16 %v195, %v194
  %v243 = vpack.c.b16 %v197, %v196
  %v244 = vpack.c.b16 %v199, %v198
  %v245 = vpack.c.b16 %v201, %v200
  %v246 = vpack.c.b16 %v203, %v202
  %v247 = vpack.c.b16 %v205, %v204
  %v248 = vpack.c.b16 %v207, %v206
  %v249 = vpack.c.b16 %v209, %v208
  %v250 = vpack.c.b16 %v211, %v210
  %v251 = vpack.c.b16 %v213, %v212
  %v252 = vpack.c.b16 %v215, %v214
  %v253 = vpack.c.b16 %v217, %v216
  %v254 = vpack.c.b16 %v219, %v218
  %v255 = vpack.c.b16 %v221, %v220
  %v256 = vpack.c.b16 %v223, %v222
  %v257 = vpack.c.b16 %v225, %v224
  %v306 = vunpack.c.l.b16 %v78
  %v307 = vunpack.c.l.b16 %v79
  %v308 = vunpack.c.l.b16 %v80
  %v309 = vunpack.c.l.b16 %v81
  %v310 = vunpack.c.l.b16 %v82
  %v311 = vunpack.c.l.b16 %v83
  %v312 = vunpack.c.l.b16 %v84
  %v313 = vunpack.c.l.b16 %v85
  %v314 = vunpack.c.l.b16 %v86
  %v315 = vunpack.c.l.b16 %v87
  %v316 = vunpack.c.l.b16 %v88
  %v317 = vunpack.c.l.b16 %v89
  %v318 = vunpack.c.l.b16 %v90
  %v319 = vunpack.c.l.b16 %v91
  %v320 = vunpack.c.l.b16 %v92
  %v321 = vunpack.c.l.b16 %v93
  %v322 = vpack.c.b16 %v307, %v306
  %v323 = vpack.c.b16 %v309, %v308
  %v324 = vpack.c.b16 %v311, %v310
  %v325 = vpack.c.b16 %v313, %v312
  %v326 = vpack.c.b16 %v315, %v314
  %v327 = vpack.c.b16 %v317, %v316
  %v328 = vpack.c.b16 %v319, %v318
  %v329 = vpack.c.b16 %v321, %v320
  %338 = vmatpush.bf16.msra.mxu0 %v329
  %339 = vmatpush.bf16.msra.mxu0 %v328
  %340 = vmatpush.bf16.msra.mxu0 %v327
  %341 = vmatpush.bf16.msra.mxu0 %v326
  %342 = vmatpush.bf16.msra.mxu0 %v325
  %343 = vmatpush.bf16.msra.mxu0 %v324
  %344 = vmatpush.bf16.msra.mxu0 %v323
  %345 = vmatpush.bf16.msra.mxu0 %v322
  %346 = vmatmul.bf16.gmra.mxu0 %v226
  %v347 = vpop.f32.mrf.mxu0
  %v348 = vadd.f32 %v96, %v347
  %v349 = vpop.f32.mrf.mxu0
  %v350 = vadd.f32 %v96, %v349
  %351 = vmatmul.bf16.gmra.mxu0 %v227
  %v352 = vpop.f32.mrf.mxu0
  %v353 = vadd.f32 %v96, %v352
  %v354 = vpop.f32.mrf.mxu0
  %v355 = vadd.f32 %v96, %v354
  %356 = vmatmul.bf16.gmra.mxu0 %v228
  %v357 = vpop.f32.mrf.mxu0
  %v358 = vadd.f32 %v96, %v357
  %v359 = vpop.f32.mrf.mxu0
  %v360 = vadd.f32 %v96, %v359
  %361 = vmatmul.bf16.gmra.mxu0 %v229
  %v362 = vpop.f32.mrf.mxu0
  %v363 = vadd.f32 %v96, %v362
  %v364 = vpop.f32.mrf.mxu0
  %v365 = vadd.f32 %v96, %v364
  %366 = vmatmul.bf16.gmra.mxu0 %v230
  %v367 = vpop.f32.mrf.mxu0
  %v368 = vadd.f32 %v96, %v367
  %v369 = vpop.f32.mrf.mxu0
  %v370 = vadd.f32 %v96, %v369
  %371 = vmatmul.bf16.gmra.mxu0 %v231
  %v372 = vpop.f32.mrf.mxu0
  %v373 = vadd.f32 %v96, %v372
  %v374 = vpop.f32.mrf.mxu0
  %v375 = vadd.f32 %v96, %v374
  %376 = vmatmul.bf16.gmra.mxu0 %v232
  %v377 = vpop.f32.mrf.mxu0
  %v378 = vadd.f32 %v96, %v377
  %v379 = vpop.f32.mrf.mxu0
  %v380 = vadd.f32 %v96, %v379
  %381 = vmatmul.bf16.gmra.mxu0 %v233
  %v382 = vpop.f32.mrf.mxu0
  %v383 = vadd.f32 %v96, %v382
  %v384 = vpop.f32.mrf.mxu0
  %v385 = vadd.f32 %v96, %v384
  %386 = vmatmul.bf16.gmra.mxu0 %v234
  %v387 = vpop.f32.mrf.mxu0
  %v388 = vadd.f32 %v96, %v387
  %v389 = vpop.f32.mrf.mxu0
  %v390 = vadd.f32 %v96, %v389
  %391 = vmatmul.bf16.gmra.mxu0 %v235
  %v392 = vpop.f32.mrf.mxu0
  %v393 = vadd.f32 %v96, %v392
  %v394 = vpop.f32.mrf.mxu0
  %v395 = vadd.f32 %v96, %v394
  %396 = vmatmul.bf16.gmra.mxu0 %v236
  %v397 = vpop.f32.mrf.mxu0
  %v398 = vadd.f32 %v96, %v397
  %v399 = vpop.f32.mrf.mxu0
  %v400 = vadd.f32 %v96, %v399
  %401 = vmatmul.bf16.gmra.mxu0 %v237
  %v402 = vpop.f32.mrf.mxu0
  %v403 = vadd.f32 %v96, %v402
  %v404 = vpop.f32.mrf.mxu0
  %v405 = vadd.f32 %v96, %v404
  %406 = vmatmul.bf16.gmra.mxu0 %v238
  %v407 = vpop.f32.mrf.mxu0
  %v408 = vadd.f32 %v96, %v407
  %v409 = vpop.f32.mrf.mxu0
  %v410 = vadd.f32 %v96, %v409
  %411 = vmatmul.bf16.gmra.mxu0 %v239
  %v412 = vpop.f32.mrf.mxu0
  %v413 = vadd.f32 %v96, %v412
  %v414 = vpop.f32.mrf.mxu0
  %v415 = vadd.f32 %v96, %v414
  %416 = vmatmul.bf16.gmra.mxu0 %v240
  %v417 = vpop.f32.mrf.mxu0
  %v418 = vadd.f32 %v96, %v417
  %v419 = vpop.f32.mrf.mxu0
  %v420 = vadd.f32 %v96, %v419
  %421 = vmatmul.bf16.gmra.mxu0 %v241
  %v422 = vpop.f32.mrf.mxu0
  %v423 = vadd.f32 %v96, %v422
  %v424 = vpop.f32.mrf.mxu0
  %v425 = vadd.f32 %v96, %v424
  %426 = vmatmul.bf16.gmra.mxu0 %v242
  %v427 = vpop.f32.mrf.mxu0
  %v428 = vadd.f32 %v96, %v427
  %v429 = vpop.f32.mrf.mxu0
  %v430 = vadd.f32 %v96, %v429
  %431 = vmatmul.bf16.gmra.mxu0 %v243
  %v432 = vpop.f32.mrf.mxu0
  %v433 = vadd.f32 %v96, %v432
  %v434 = vpop.f32.mrf.mxu0
  %v435 = vadd.f32 %v96, %v434
  %436 = vmatmul.bf16.gmra.mxu0 %v244
  %v437 = vpop.f32.mrf.mxu0
  %v438 = vadd.f32 %v96, %v437
  %v439 = vpop.f32.mrf.mxu0
  %v440 = vadd.f32 %v96, %v439
  %441 = vmatmul.bf16.gmra.mxu0 %v245
  %v442 = vpop.f32.mrf.mxu0
  %v443 = vadd.f32 %v96, %v442
  %v444 = vpop.f32.mrf.mxu0
  %v445 = vadd.f32 %v96, %v444
  %446 = vmatmul.bf16.gmra.mxu0 %v246
  %v447 = vpop.f32.mrf.mxu0
  %v448 = vadd.f32 %v96, %v447
  %v449 = vpop.f32.mrf.mxu0
  %v450 = vadd.f32 %v96, %v449
  %451 = vmatmul.bf16.gmra.mxu0 %v247
  %v452 = vpop.f32.mrf.mxu0
  %v453 = vadd.f32 %v96, %v452
  %v454 = vpop.f32.mrf.mxu0
  %v455 = vadd.f32 %v96, %v454
  %456 = vmatmul.bf16.gmra.mxu0 %v248
  %v457 = vpop.f32.mrf.mxu0
  %v458 = vadd.f32 %v96, %v457
  %v459 = vpop.f32.mrf.mxu0
  %v460 = vadd.f32 %v96, %v459
  %461 = vmatmul.bf16.gmra.mxu0 %v249
  %v462 = vpop.f32.mrf.mxu0
  %v463 = vadd.f32 %v96, %v462
  %v464 = vpop.f32.mrf.mxu0
  %v465 = vadd.f32 %v96, %v464
  %466 = vmatmul.bf16.gmra.mxu0 %v250
  %v467 = vpop.f32.mrf.mxu0
  %v468 = vadd.f32 %v96, %v467
  %v469 = vpop.f32.mrf.mxu0
  %v470 = vadd.f32 %v96, %v469
  %471 = vmatmul.bf16.gmra.mxu0 %v251
  %v472 = vpop.f32.mrf.mxu0
  %v473 = vadd.f32 %v96, %v472
  %v474 = vpop.f32.mrf.mxu0
  %v475 = vadd.f32 %v96, %v474
  %476 = vmatmul.bf16.gmra.mxu0 %v252
  %v477 = vpop.f32.mrf.mxu0
  %v478 = vadd.f32 %v96, %v477
  %v479 = vpop.f32.mrf.mxu0
  %v480 = vadd.f32 %v96, %v479
  %481 = vmatmul.bf16.gmra.mxu0 %v253
  %v482 = vpop.f32.mrf.mxu0
  %v483 = vadd.f32 %v96, %v482
  %v484 = vpop.f32.mrf.mxu0
  %v485 = vadd.f32 %v96, %v484
  %486 = vmatmul.bf16.gmra.mxu0 %v254
  %v487 = vpop.f32.mrf.mxu0
  %v488 = vadd.f32 %v96, %v487
  %v489 = vpop.f32.mrf.mxu0
  %v490 = vadd.f32 %v96, %v489
  %491 = vmatmul.bf16.gmra.mxu0 %v255
  %v492 = vpop.f32.mrf.mxu0
  %v493 = vadd.f32 %v96, %v492
  %v494 = vpop.f32.mrf.mxu0
  %v495 = vadd.f32 %v96, %v494
  %496 = vmatmul.bf16.gmra.mxu0 %v256
  %v497 = vpop.f32.mrf.mxu0
  %v498 = vadd.f32 %v96, %v497
  %v499 = vpop.f32.mrf.mxu0
  %v500 = vadd.f32 %v96, %v499
  %501 = vmatmul.bf16.gmra.mxu0 %v257
  %v502 = vpop.f32.mrf.mxu0
  %v503 = vadd.f32 %v96, %v502
  %v504 = vpop.f32.mrf.mxu0
  %v505 = vadd.f32 %v96, %v504
  %506 = vdwg.mxu0
  %v507 = vmax.f32 %v348, 0.0
  %v508 = vmax.f32 %v350, 0.0
  %v509 = vmax.f32 %v353, 0.0
  %v510 = vmax.f32 %v355, 0.0
  %v511 = vmax.f32 %v358, 0.0
  %v512 = vmax.f32 %v360, 0.0
  %v513 = vmax.f32 %v363, 0.0
  %v514 = vmax.f32 %v365, 0.0
  %v515 = vmax.f32 %v368, 0.0
  %v516 = vmax.f32 %v370, 0.0
  %v517 = vmax.f32 %v373, 0.0
  %v518 = vmax.f32 %v375, 0.0
  %v519 = vmax.f32 %v378, 0.0
  %v520 = vmax.f32 %v380, 0.0
  %v521 = vmax.f32 %v383, 0.0
  %v522 = vmax.f32 %v385, 0.0
  %v523 = vmax.f32 %v388, 0.0
  %v524 = vmax.f32 %v390, 0.0
  %v525 = vmax.f32 %v393, 0.0
  %v526 = vmax.f32 %v395, 0.0
  %v527 = vmax.f32 %v398, 0.0
  %v528 = vmax.f32 %v400, 0.0
  %v529 = vmax.f32 %v403, 0.0
  %v530 = vmax.f32 %v405, 0.0
  %v531 = vmax.f32 %v408, 0.0
  %v532 = vmax.f32 %v410, 0.0
  %v533 = vmax.f32 %v413, 0.0
  %v534 = vmax.f32 %v415, 0.0
  %v535 = vmax.f32 %v418, 0.0
  %v536 = vmax.f32 %v420, 0.0
  %v537 = vmax.f32 %v423, 0.0
  %v538 = vmax.f32 %v425, 0.0
  %v539 = vmax.f32 %v428, 0.0
  %v540 = vmax.f32 %v430, 0.0
  %v541 = vmax.f32 %v433, 0.0
  %v542 = vmax.f32 %v435, 0.0
  %v543 = vmax.f32 %v438, 0.0
  %v544 = vmax.f32 %v440, 0.0
  %v545 = vmax.f32 %v443, 0.0
  %v546 = vmax.f32 %v445, 0.0
  %v547 = vmax.f32 %v448, 0.0
  %v548 = vmax.f32 %v450, 0.0
  %v549 = vmax.f32 %v453, 0.0
  %v550 = vmax.f32 %v455, 0.0
  %v551 = vmax.f32 %v458, 0.0
  %v552 = vmax.f32 %v460, 0.0
  %v553 = vmax.f32 %v463, 0.0
  %v554 = vmax.f32 %v465, 0.0
  %v555 = vmax.f32 %v468, 0.0
  %v556 = vmax.f32 %v470, 0.0
  %v557 = vmax.f32 %v473, 0.0
  %v558 = vmax.f32 %v475, 0.0
  %v559 = vmax.f32 %v478, 0.0
  %v560 = vmax.f32 %v480, 0.0
  %v561 = vmax.f32 %v483, 0.0
  %v562 = vmax.f32 %v485, 0.0
  %v563 = vmax.f32 %v488, 0.0
  %v564 = vmax.f32 %v490, 0.0
  %v565 = vmax.f32 %v493, 0.0
  %v566 = vmax.f32 %v495, 0.0
  %v567 = vmax.f32 %v498, 0.0
  %v568 = vmax.f32 %v500, 0.0
  %v569 = vmax.f32 %v503, 0.0
  %v570 = vmax.f32 %v505, 0.0
  %571 = vst [vmem:[%s3] sm:$0xff] %v507
  %572 = vst [vmem:[%s3 + $0x8] sm:$0xff] %v508
  %573 = vst [vmem:[%s3 + $0x10] sm:$0xff] %v509
  %574 = vst [vmem:[%s3 + $0x18] sm:$0xff] %v510
  %575 = vst [vmem:[%s3 + $0x20] sm:$0xff] %v511
  %576 = vst [vmem:[%s3 + $0x28] sm:$0xff] %v512
  %577 = vst [vmem:[%s3 + $0x30] sm:$0xff] %v513
  %578 = vst [vmem:[%s3 + $0x38] sm:$0xff] %v514
  %579 = vst [vmem:[%s3 + $0x40] sm:$0xff] %v515
  %580 = vst [vmem:[%s3 + $0x48] sm:$0xff] %v516
  %581 = vst [vmem:[%s3 + $0x50] sm:$0xff] %v517
  %582 = vst [vmem:[%s3 + $0x58] sm:$0xff] %v518
  %583 = vst [vmem:[%s3 + $0x60] sm:$0xff] %v519
  %584 = vst [vmem:[%s3 + $0x68] sm:$0xff] %v520
  %585 = vst [vmem:[%s3 + $0x70] sm:$0xff] %v521
  %586 = vst [vmem:[%s3 + $0x78] sm:$0xff] %v522
  %587 = vst [vmem:[%s3 + $0x80] sm:$0xff] %v523
  %588 = vst [vmem:[%s3 + $0x88] sm:$0xff] %v524
  %589 = vst [vmem:[%s3 + $0x90] sm:$0xff] %v525
  %590 = vst [vmem:[%s3 + $0x98] sm:$0xff] %v526
  %591 = vst [vmem:[%s3 + $0xa0] sm:$0xff] %v527
  %592 = vst [vmem:[%s3 + $0xa8] sm:$0xff] %v528
  %593 = vst [vmem:[%s3 + $0xb0] sm:$0xff] %v529
  %594 = vst [vmem:[%s3 + $0xb8] sm:$0xff] %v530
  %595 = vst [vmem:[%s3 + $0xc0] sm:$0xff] %v531
  %596 = vst [vmem:[%s3 + $0xc8] sm:$0xff] %v532
  %597 = vst [vmem:[%s3 + $0xd0] sm:$0xff] %v533
  %598 = vst [vmem:[%s3 + $0xd8] sm:$0xff] %v534
  %599 = vst [vmem:[%s3 + $0xe0] sm:$0xff] %v535
  %600 = vst [vmem:[%s3 + $0xe8] sm:$0xff] %v536
  %601 = vst [vmem:[%s3 + $0xf0] sm:$0xff] %v537
  %602 = vst [vmem:[%s3 + $0xf8] sm:$0xff] %v538
  %603 = vst [vmem:[%s3 + $0x100] sm:$0xff] %v539
  %604 = vst [vmem:[%s3 + $0x108] sm:$0xff] %v540
  %605 = vst [vmem:[%s3 + $0x110] sm:$0xff] %v541
  %606 = vst [vmem:[%s3 + $0x118] sm:$0xff] %v542
  %607 = vst [vmem:[%s3 + $0x120] sm:$0xff] %v543
  %608 = vst [vmem:[%s3 + $0x128] sm:$0xff] %v544
  %609 = vst [vmem:[%s3 + $0x130] sm:$0xff] %v545
  %610 = vst [vmem:[%s3 + $0x138] sm:$0xff] %v546
  %611 = vst [vmem:[%s3 + $0x140] sm:$0xff] %v547
  %612 = vst [vmem:[%s3 + $0x148] sm:$0xff] %v548
  %613 = vst [vmem:[%s3 + $0x150] sm:$0xff] %v549
  %614 = vst [vmem:[%s3 + $0x158] sm:$0xff] %v550
  %615 = vst [vmem:[%s3 + $0x160] sm:$0xff] %v551
  %616 = vst [vmem:[%s3 + $0x168] sm:$0xff] %v552
  %617 = vst [vmem:[%s3 + $0x170] sm:$0xff] %v553
  %618 = vst [vmem:[%s3 + $0x178] sm:$0xff] %v554
  %619 = vst [vmem:[%s3 + $0x180] sm:$0xff] %v555
  %620 = vst [vmem:[%s3 + $0x188] sm:$0xff] %v556
  %621 = vst [vmem:[%s3 + $0x190] sm:$0xff] %v557
  %622 = vst [vmem:[%s3 + $0x198] sm:$0xff] %v558
  %623 = vst [vmem:[%s3 + $0x1a0] sm:$0xff] %v559
  %624 = vst [vmem:[%s3 + $0x1a8] sm:$0xff] %v560
  %625 = vst [vmem:[%s3 + $0x1b0] sm:$0xff] %v561
  %626 = vst [vmem:[%s3 + $0x1b8] sm:$0xff] %v562
  %627 = vst [vmem:[%s3 + $0x1c0] sm:$0xff] %v563
  %628 = vst [vmem:[%s3 + $0x1c8] sm:$0xff] %v564
  %629 = vst [vmem:[%s3 + $0x1d0] sm:$0xff] %v565
  %630 = vst [vmem:[%s3 + $0x1d8] sm:$0xff] %v566
  %631 = vst [vmem:[%s3 + $0x1e0] sm:$0xff] %v567
  %632 = vst [vmem:[%s3 + $0x1e8] sm:$0xff] %v568
  %633 = vst [vmem:[%s3 + $0x1f0] sm:$0xff] %v569
  %634 = vst [vmem:[%s3 + $0x1f8] sm:$0xff] %v570
  // Predicated region
  $region14: #{basic_conv2d.1} parent=0 // pred_check
    _
  $region15: #{basic_conv2d.1} parent=0 // pred_check_branch
    %636 = sbr.rel (0) target = $region17
  $region16: #{basic_conv2d.1} parent=0 // pred_region
    _
  $region17: #{basic_conv2d.1} parent=0 // pred_fallthru
    _
  // Predicated region
  $region18: #{basic_conv2d.1} parent=0 // pred_check
    _
  $region19: #{basic_conv2d.1} parent=0 // pred_check_branch
    %638 = sbr.rel (0) target = $region21
  $region20: #{basic_conv2d.1} parent=0 // pred_region
    _
  $region21: #{basic_conv2d.1} parent=0 // pred_fallthru
    _

</llo_original>
